<compile_context>
chip_gen: v5e
topology: v5e:2x2
jax: 0.10.0
libtpu: 0.0.40
codegen_flags: <defaults>
</compile_context>

<pallas_src>
import functools
import math

import jax
import jax.numpy as jnp
from jax import lax
from jax.experimental import pallas as pl
from jax.experimental.pallas import tpu as pltpu


# ----------------------------------------------------------------------------
# Per-generation VMEM budget (v5e/v6e: 128 MiB physical, v7x: 64 MiB).
# ----------------------------------------------------------------------------
@functools.lru_cache(maxsize=None)
def _vmem_budget_bytes():
    try:
        cap = int(pltpu.get_tpu_info().vmem_capacity_bytes)
    except Exception:
        cap = 64 * 1024 * 1024          # conservative (v7x-sized) fallback
    return min((cap * 3) // 4, 100 * 1024 * 1024)


def _pick_tile(dim, target, align):
    """Largest `align`-multiple tile <= target that divides dim (else full dim)."""
    if dim <= target:
        return dim
    t = (target // align) * align
    while t >= align:
        if dim % t == 0:
            return t
        t -= align
    return dim


# ----------------------------------------------------------------------------
# Tiled linear:  out = x @ w_t   (w_t is the pre-transposed nn.Linear weight)
# ----------------------------------------------------------------------------
def _linear_kernel(x_ref, w_ref, o_ref, acc_ref):
    @pl.when(pl.program_id(2) == 0)
    def _init():
        acc_ref[...] = jnp.zeros(acc_ref.shape, acc_ref.dtype)

    acc_ref[...] += jnp.dot(x_ref[...], w_ref[...],
                            preferred_element_type=jnp.float32)

    @pl.when(pl.program_id(2) == pl.num_programs(2) - 1)
    def _store():
        o_ref[...] = acc_ref[...].astype(o_ref.dtype)


def pallas_linear(x, w_t, *, tm=512, tn=512, tk=512):
    """x: (M, K) @ w_t: (K, N) -> (M, N)."""
    M, K = x.shape
    K2, N = w_t.shape
    assert K == K2
    tm = _pick_tile(M, tm, 8)
    tn = _pick_tile(N, tn, 128)
    tk = _pick_tile(K, tk, 128)
    grid = (M // tm, N // tn, K // tk)
    return pl.pallas_call(
        _linear_kernel,
        out_shape=jax.ShapeDtypeStruct((M, N), x.dtype),
        grid_spec=pltpu.PrefetchScalarGridSpec(
            num_scalar_prefetch=0,
            grid=grid,
            in_specs=[
                pl.BlockSpec((tm, tk), lambda i, j, k: (i, k)),
                pl.BlockSpec((tk, tn), lambda i, j, k: (k, j)),
            ],
            out_specs=pl.BlockSpec((tm, tn), lambda i, j, k: (i, j)),
            scratch_shapes=[pltpu.VMEM((tm, tn), jnp.float32)],
        ),
        compiler_params=pltpu.CompilerParams(
            dimension_semantics=("parallel", "parallel", "arbitrary"),
            vmem_limit_bytes=_vmem_budget_bytes()),
    )(x, w_t)


# ----------------------------------------------------------------------------
# Flash attention on (B, S, H*D) with fused RoPE + softmax scale.
# ----------------------------------------------------------------------------
def _flash_attn_kernel(q_ref, k_ref, v_ref, cq_ref, sq_ref, ck_ref, sk_ref,
                       o_ref, qr_scr, m_scr, l_scr, acc_scr, *,
                       n_heads, head_dim, causal):
    qi = pl.program_id(1)
    kv = pl.program_id(2)
    nkv = pl.num_programs(2)
    tq = q_ref.shape[1]
    tk = k_ref.shape[1]
    half = head_dim // 2
    NEG = -1e30

    def rotate_sign(rows):
        lane = lax.broadcasted_iota(jnp.int32, (rows, head_dim), 1)
        return jnp.where(lane < half, -1.0, 1.0).astype(jnp.float32)

    def rope(x, cos, sin, sign):
        # rotate_half([x1, x2]) = [-x2, x1]: lane roll by D/2 (XLU) + sign flip.
        return x * cos + pltpu.roll(x, shift=half, axis=1) * sign * sin

    @pl.when(kv == 0)
    def _init():
        m_scr[...] = jnp.full(m_scr.shape, NEG, m_scr.dtype)
        l_scr[...] = jnp.zeros(l_scr.shape, l_scr.dtype)
        acc_scr[...] = jnp.zeros(acc_scr.shape, acc_scr.dtype)
        # RoPE (with the 1/sqrt(D) softmax scale folded into cq/sq) applied to
        # the q block exactly once per (batch, q-block); reused from VMEM for
        # every kv step.  Direct per-head slice stores (lane-dense, no concat).
        cq = cq_ref[...].astype(jnp.float32)
        sq = sq_ref[...].astype(jnp.float32)
        sign_q = rotate_sign(tq)
        for h in range(n_heads):
            sl = slice(h * head_dim, (h + 1) * head_dim)
            qh = q_ref[0, :, sl].astype(jnp.float32)
            qr_scr[:, sl] = rope(qh, cq, sq, sign_q).astype(qr_scr.dtype)

    def _update(apply_mask):
        ck = ck_ref[...].astype(jnp.float32)
        sk = sk_ref[...].astype(jnp.float32)
        sign_k = rotate_sign(tk)
        if apply_mask:
            row = qi * tq + lax.broadcasted_iota(jnp.int32, (tq, tk), 0)
            col = kv * tk + lax.broadcasted_iota(jnp.int32, (tq, tk), 1)
            keep = col <= row
        for h in range(n_heads):
            sl = slice(h * head_dim, (h + 1) * head_dim)
            q_h = qr_scr[:, sl]                                 # RoPE'd + scaled
            k_h = rope(k_ref[0, :, sl].astype(jnp.float32),
                       ck, sk, sign_k).astype(q_h.dtype)
            # QK^T in NT form (contract head_dim of both): no k relayout.
            s = lax.dot_general(
                q_h, k_h,
                dimension_numbers=(((1,), (1,)), ((), ())),
                preferred_element_type=jnp.float32)             # (tq, tk)
            if apply_mask:
                s = jnp.where(keep, s, NEG)
            m_prev = m_scr[:, h:h + 1]                          # (tq, 1)
            m_new = jnp.maximum(m_prev, jnp.max(s, axis=-1, keepdims=True))
            alpha = jnp.exp(m_prev - m_new)
            p = jnp.exp(s - m_new)
            l_scr[:, h:h + 1] = alpha * l_scr[:, h:h + 1] + jnp.sum(
                p, axis=-1, keepdims=True)
            v_h = v_ref[0, :, sl]
            pv = jnp.dot(p.astype(v_h.dtype), v_h,
                         preferred_element_type=jnp.float32)    # (tq, D)
            acc_scr[:, sl] = alpha * acc_scr[:, sl] + pv
            m_scr[:, h:h + 1] = m_new

    if causal:
        # Blocks entirely above the diagonal are skipped (their K/V DMAs are
        # also elided by the clamped index_map in the wrapper); fully-kept
        # blocks run select-free; only diagonal-crossing blocks pay the mask.
        fully_kept = kv * tk + tk - 1 <= qi * tq
        partial = jnp.logical_and(kv * tk <= qi * tq + tq - 1,
                                  jnp.logical_not(fully_kept))

        @pl.when(fully_kept)
        def _run_unmasked():
            _update(False)

        @pl.when(partial)
        def _run_masked():
            _update(True)
    else:
        _update(False)

    @pl.when(kv == nkv - 1)
    def _finalize():
        # Per-head lane-dense stores straight from the accumulator (no concat).
        for h in range(n_heads):
            sl = slice(h * head_dim, (h + 1) * head_dim)
            inv_l = pl.reciprocal(l_scr[:, h:h + 1], approx=True)  # EUP, ~free
            o_ref[0, :, sl] = (acc_scr[:, sl] * inv_l).astype(o_ref.dtype)


def _flash_tiles(S, HD, D, itemsize, budget):
    """Largest (tq, tk) whose double-buffered pipeline fits the VMEM budget."""
    def footprint(tq, tk):
        blocks = 2 * (2 * tq + 2 * tk) * HD * itemsize   # dbl-buffered q/out + k/v
        tables = 2 * 2 * (tq + tk) * D * 4               # dbl-buffered cos/sin
        scratch = tq * HD * (4 + itemsize)               # f32 acc + RoPE'd q
        ml = 2 * tq * 128 * 4                            # m/l (lane padded in vregs)
        return blocks + tables + scratch + ml

    for tq_t, tk_t in ((1024, 512), (512, 512), (512, 256),
                       (256, 256), (256, 128), (128, 128)):
        if footprint(tq_t, tk_t) <= 0.6 * budget:
            break
    else:
        tq_t, tk_t = 128, 128
    tq = _pick_tile(S, tq_t, 16 if itemsize < 4 else 8)   # bf16: sublane pairs
    tk = _pick_tile(S, tk_t, 128)                         # lane-dense score tiles
    if footprint(tq, tk) > budget:
        raise ValueError(
            f"Flash tiles tq={tq}, tk={tk} (S={S}, HD={HD}) exceed the "
            f"{budget >> 20} MiB VMEM budget; pad S to a multiple of 128.")
    return tq, tk


def pallas_flash_attention(q, k, v, cos_q, sin_q, cos_k, sin_k, *,
                           n_heads, is_causal):
    """q, k, v: (B, S, H*D) lane-dense; RoPE + 1/sqrt(D) scale fused in-kernel
    (scale pre-folded into cos_q/sin_q)."""
    B, S, HD = q.shape
    D = HD // n_heads
    budget = _vmem_budget_bytes()
    tq, tk = _flash_tiles(S, HD, D, q.dtype.itemsize, budget)

    if is_causal:
        # Clamp the kv block index so K/V (and cos_k/sin_k) tiles above the
        # causal diagonal are never DMA'd: repeated block index => DMA elided.
        def kv_block(i, j):
            return jnp.minimum(j, (i * tq + tq - 1) // tk)
    else:
        def kv_block(i, j):
            return j

    kernel = functools.partial(_flash_attn_kernel, n_heads=n_heads, head_dim=D,
                               causal=is_causal)
    return pl.pallas_call(
        kernel,
        out_shape=jax.ShapeDtypeStruct((B, S, HD), q.dtype),
        grid_spec=pltpu.PrefetchScalarGridSpec(
            num_scalar_prefetch=0,
            grid=(B, S // tq, S // tk),
            in_specs=[
                pl.BlockSpec((1, tq, HD), lambda b, i, j: (b, i, 0)),
                pl.BlockSpec((1, tk, HD), lambda b, i, j: (b, kv_block(i, j), 0)),
                pl.BlockSpec((1, tk, HD), lambda b, i, j: (b, kv_block(i, j), 0)),
                pl.BlockSpec((tq, D), lambda b, i, j: (i, 0)),
                pl.BlockSpec((tq, D), lambda b, i, j: (i, 0)),
                pl.BlockSpec((tk, D), lambda b, i, j: (kv_block(i, j), 0)),
                pl.BlockSpec((tk, D), lambda b, i, j: (kv_block(i, j), 0)),
            ],
            out_specs=pl.BlockSpec((1, tq, HD), lambda b, i, j: (b, i, 0)),
            scratch_shapes=[
                pltpu.VMEM((tq, HD), q.dtype),              # RoPE'd + scaled q
                pltpu.VMEM((tq, n_heads), jnp.float32),     # running max (lane-packed)
                pltpu.VMEM((tq, n_heads), jnp.float32),     # running sum (lane-packed)
                pltpu.VMEM((tq, HD), jnp.float32),          # output accumulator
            ],
        ),
        compiler_params=pltpu.CompilerParams(
            dimension_semantics=("parallel", "parallel", "arbitrary"),
            vmem_limit_bytes=budget),
    )(q, k, v, cos_q, sin_q, cos_k, sin_k)


# ----------------------------------------------------------------------------
# Full forward pass (glue in plain JAX, hot paths in Pallas)
# ----------------------------------------------------------------------------
def rope_cos_sin(seqlen, head_dim, theta=10000.0):
    freqs = 1.0 / (theta ** (jnp.arange(0, head_dim, 2, dtype=jnp.float32) / head_dim))
    angles = jnp.outer(jnp.arange(seqlen, dtype=jnp.float32), freqs)      # (S, D/2)
    cos = jnp.concatenate([jnp.cos(angles), jnp.cos(angles)], axis=-1)    # (S, D)
    sin = jnp.concatenate([jnp.sin(angles), jnp.sin(angles)], axis=-1)
    return cos, sin


def attention_forward(x, w_in, w_out, n_heads, is_causal=False, compute_dtype=None):
    """compute_dtype=jnp.bfloat16 -> bf16 matmul inputs (f32 accumulation inside)."""
    bsz, seqlen, dim = x.shape
    head_dim = dim // n_heads
    hd = n_heads * head_dim

    if compute_dtype is not None:
        x = x.astype(compute_dtype)
        w_in = w_in.astype(compute_dtype)
        w_out = w_out.astype(compute_dtype)

    # One-time wrapper-side transposes of the constant PyTorch (out,in) weights
    # so the linear kernel runs a plain NN matmul (no per-tile XLU transpose).
    w_q_t = w_in[:hd].T
    w_k_t = w_in[hd:2 * hd].T
    w_v_t = w_in[2 * hd:3 * hd].T
    w_out_t = w_out.T

    x2d = x.reshape(bsz * seqlen, dim)
    # Activations stay in the lane-dense (B, S, H*D) layout end-to-end.
    q = pallas_linear(x2d, w_q_t).reshape(bsz, seqlen, hd)
    k = pallas_linear(x2d, w_k_t).reshape(bsz, seqlen, hd)
    v = pallas_linear(x2d, w_v_t).reshape(bsz, seqlen, hd)

    # RoPE is fused into the flash kernel (no extra HBM round trip for q/k);
    # the 1/sqrt(D) softmax scale is folded into q's cos/sin tables.
    cos, sin = rope_cos_sin(seqlen, head_dim)
    scale = 1.0 / math.sqrt(head_dim)
    out = pallas_flash_attention(q, k, v, cos * scale, sin * scale, cos, sin,
                                 n_heads=n_heads, is_causal=is_causal)
    out = pallas_linear(out.reshape(bsz * seqlen, hd), w_out_t)
    return out.reshape(bsz, seqlen, dim)


# Pure-JAX reference for correctness checking.
def reference_forward(x, w_in, w_out, n_heads, is_causal):
    with jax.default_matmul_precision("highest"):
        bsz, seqlen, dim = x.shape
        D = dim // n_heads
        qkv = x @ w_in.T
        q, k, v = jnp.split(qkv, 3, axis=-1)
        q, k, v = [t.reshape(bsz, seqlen, n_heads, D) for t in (q, k, v)]
        cos, sin = rope_cos_sin(seqlen, D)

        def rope(t):
            t1, t2 = t[..., :D // 2], t[..., D // 2:]
            rot = jnp.concatenate([-t2, t1], axis=-1)
            return t * cos[None, :, None, :] + rot * sin[None, :, None, :]

        q, k = rope(q), rope(k)
        s = jnp.einsum("bqhd,bkhd->bhqk", q, k) / math.sqrt(D)
        if is_causal:
            mask = jnp.tril(jnp.ones((seqlen, seqlen), dtype=bool))
            s = jnp.where(mask[None, None], s, -jnp.inf)
        p = jax.nn.softmax(s, axis=-1)
        o = jnp.einsum("bhqk,bkhd->bqhd", p, v).reshape(bsz, seqlen, n_heads * D)
        return o @ w_out.T


if __name__ == "__main__":
    # Small, module-consistent shapes: dim=32, n_heads=4 -> head_dim=8.
    bsz, seqlen, dim, n_heads = 2, 8, 32, 4

    key = jax.random.PRNGKey(0)
    kx, kwi, kwo = jax.random.split(key, 3)
    x = jax.random.normal(kx, (bsz, seqlen, dim), dtype=jnp.float32)
    # PyTorch nn.Linear weight layout: (out_features, in_features).
    w_in = jax.random.normal(kwi, (3 * dim, dim), dtype=jnp.float32) / math.sqrt(dim)
    w_out = jax.random.normal(kwo, (dim, dim), dtype=jnp.float32) / math.sqrt(dim)

    for causal in (False, True):
        y = attention_forward(x, w_in, w_out, n_heads, is_causal=causal)
        jax.block_until_ready(y)
        assert y.shape == (bsz, seqlen, dim)
        y_ref = reference_forward(x, w_in, w_out, n_heads, is_causal=causal)
        err = float(jnp.max(jnp.abs(y - y_ref)))
        assert err < 2e-2, f"causal={causal} max abs err {err}"

    # bf16 matmul-input path (MXU-friendly on v6e / v7x); f32 accumulation inside.
    y_bf16 = attention_forward(x, w_in, w_out, n_heads, is_causal=True,
                               compute_dtype=jnp.bfloat16)
    jax.block_until_ready(y_bf16)
    assert y_bf16.shape == (bsz, seqlen, dim)
    y_ref = reference_forward(x, w_in, w_out, n_heads, is_causal=True)
    err_bf16 = float(jnp.max(jnp.abs(y_bf16.astype(jnp.float32) - y_ref)))
    assert err_bf16 < 2e-1, f"bf16 path max abs err {err_bf16}"

    print("KERNEL_OK")
</pallas_src>

<mosaic_0001>
module attributes {stable_mosaic.version = 11 : i64} {
  func.func @_linear_kernel(%arg0: i32, %arg1: i32, %arg2: i32, %arg3: memref<16x32xf32, #tpu.memory_space<vmem>>, %arg4: memref<32x32xf32, #tpu.memory_space<vmem>>, %arg5: memref<16x32xf32, #tpu.memory_space<vmem>>, %arg6: memref<16x32xf32, #tpu.memory_space<vmem>>) attributes {dimension_semantics = [#tpu.dimension_semantics<parallel>, #tpu.dimension_semantics<parallel>, #tpu.dimension_semantics<arbitrary>], iteration_bounds = array<i64: 1, 1, 1>, scalar_prefetch = 0 : i64, scratch_operands = 1 : i64, tpu.core_type = #tpu.core_type<tc>, window_params = [{transform_indices = @transform_0, window_bounds = array<i64: 16, 32>}, {transform_indices = @transform_1, window_bounds = array<i64: 32, 32>}, {transform_indices = @transform_2, window_bounds = array<i64: 16, 32>}]} {
    %c0_i32 = arith.constant 0 : i32
    %0 = arith.cmpi eq, %arg2, %c0_i32 : i32
    %1 = arith.extui %0 : i1 to i32
    %c0_i32_0 = arith.constant 0 : i32
    %2 = arith.cmpi ne, %1, %c0_i32_0 : i32
    scf.if %2 {
      %cst_10 = arith.constant 0.000000e+00 : f32
      %12 = vector.broadcast %cst_10 : f32 to vector<16x32xf32>
      %c0_11 = arith.constant 0 : index
      %c0_12 = arith.constant 0 : index
      %13 = vector.load %arg6[%c0_11, %c0_12] : memref<16x32xf32, #tpu.memory_space<vmem>>, vector<16x32xf32>
      tpu.vector_store %arg6[%c0_11, %c0_12], %12 {strides = array<i32>} : memref<16x32xf32, #tpu.memory_space<vmem>>, vector<16x32xf32>,
    } else {
    }
    %c0 = arith.constant 0 : index
    %c0_1 = arith.constant 0 : index
    %3 = vector.load %arg6[%c0, %c0_1] : memref<16x32xf32, #tpu.memory_space<vmem>>, vector<16x32xf32>
    %c0_2 = arith.constant 0 : index
    %c0_3 = arith.constant 0 : index
    %4 = vector.load %arg3[%c0_2, %c0_3] : memref<16x32xf32, #tpu.memory_space<vmem>>, vector<16x32xf32>
    %c0_4 = arith.constant 0 : index
    %c0_5 = arith.constant 0 : index
    %5 = vector.load %arg4[%c0_4, %c0_5] : memref<32x32xf32, #tpu.memory_space<vmem>>, vector<32x32xf32>
    %cst = arith.constant dense<0.000000e+00> : vector<16x32xf32>
    %6 = tpu.matmul %4, %5, %cst {dimension_numbers = #tpu.dot_dimension_numbers<[1], [0], [0], [1], [0, 0, 1, 1], [], []>} : vector<16x32xf32>, vector<32x32xf32>, vector<16x32xf32> -> vector<16x32xf32>
    %7 = arith.addf %3, %6 : vector<16x32xf32>
    %c0_6 = arith.constant 0 : index
    %c0_7 = arith.constant 0 : index
    %8 = vector.load %arg6[%c0_6, %c0_7] : memref<16x32xf32, #tpu.memory_space<vmem>>, vector<16x32xf32>
    tpu.vector_store %arg6[%c0_6, %c0_7], %7 {strides = array<i32>} : memref<16x32xf32, #tpu.memory_space<vmem>>, vector<16x32xf32>,
    %c0_i32_8 = arith.constant 0 : i32
    %9 = arith.cmpi eq, %arg2, %c0_i32_8 : i32
    %10 = arith.extui %9 : i1 to i32
    %c0_i32_9 = arith.constant 0 : i32
    %11 = arith.cmpi ne, %10, %c0_i32_9 : i32
    scf.if %11 {
      %c0_10 = arith.constant 0 : index
      %c0_11 = arith.constant 0 : index
      %12 = vector.load %arg6[%c0_10, %c0_11] : memref<16x32xf32, #tpu.memory_space<vmem>>, vector<16x32xf32>
      %c0_12 = arith.constant 0 : index
      %c0_13 = arith.constant 0 : index
      %13 = vector.load %arg5[%c0_12, %c0_13] : memref<16x32xf32, #tpu.memory_space<vmem>>, vector<16x32xf32>
      tpu.vector_store %arg5[%c0_12, %c0_13], %12 {strides = array<i32>} : memref<16x32xf32, #tpu.memory_space<vmem>>, vector<16x32xf32>,
    } else {
    }
    return
  }
  func.func @transform_0(%arg0: i32, %arg1: i32, %arg2: i32) -> (i32, i32) {
    %c0_i32 = arith.constant 0 : i32
    return %arg0, %arg2 : i32, i32
  }
  func.func @transform_1(%arg0: i32, %arg1: i32, %arg2: i32) -> (i32, i32) {
    %c0_i32 = arith.constant 0 : i32
    return %arg2, %arg1 : i32, i32
  }
  func.func @transform_2(%arg0: i32, %arg1: i32, %arg2: i32) -> (i32, i32) {
    %c0_i32 = arith.constant 0 : i32
    return %arg0, %arg1 : i32, i32
  }
}

</mosaic_0001>

<llo_original>
// kernel: tpu_custom_call.1
$region0: #{tpu_custom_call.1}
  #allocation0 [shape = 'u32[]', space=smem, size = 0x4, offset = 0x4, fixed_abs, tag = 'smem constant byte address 0x4 - core index']
  #allocation1 [shape = 'u32[72,128]{1,0:T(1,128)}', space=vmem, size = 0x9000, scoped, tag = 'internal scratch']
  #allocation2 [shape = 'f32[16,32]{1,0:T(8,128)}', space=vmem, size = 0x2000, scoped, tag = 'scratch operand']
  %s0 = inlined_call_operand.hbm [shape: f32[16,32], index: 0, kind: input, shape index: {}]
  %s1 = inlined_call_operand.hbm [shape: f32[32,32], index: 1, kind: input, shape index: {}]
  %s2 = inlined_call_operand.hbm [shape: f32[16,32], index: 2, kind: output, shape index: {}]
  %s3 = sld [smem:[#allocation0]]
  $region34: #{tpu_custom_call.1} parent=0
    _
  %s5 = ssub.s32 1, %s3
  %s6 = scalar_select 0, %s5, %s3
  $region1: #{tpu_custom_call.1} parent=0
    #allocation3 [shape = 'u8[8192]{0}', space=vmem, size = 0x2000, scoped, tag = 'input window, operand 0, single buffered']
    #allocation4 [shape = 's32[1]{0}', space=sflag, size = 0x4, scoped, tag = 'scoped memory for tpu_custom_call.1']
    #allocation5 [shape = 's32[1]{0}', space=sflag, size = 0x4, scoped, tag = 'scoped memory for tpu_custom_call.1']
    #allocation6 [shape = 'u8[16384]{0}', space=vmem, size = 0x4000, scoped, tag = 'input window, operand 1, single buffered']
    #allocation7 [shape = 's32[1]{0}', space=sflag, size = 0x4, scoped, tag = 'scoped memory for tpu_custom_call.1']
    #allocation8 [shape = 'u8[8192]{0}', space=vmem, size = 0x2000, scoped, tag = 'output window, operand 0, single buffered']
    %7 = vsyncpa [#allocation4], 0
    %8 = vsyncpa [#allocation7], 0
    %9 = vsyncpa [#allocation5], 0
    // Predicated region
    $region2: #{tpu_custom_call.1} parent=1 // pred_check
      _
    $region3: #{tpu_custom_call.1} parent=1 // pred_check_branch
      %11 = sbr.rel (0) target = $region5
    $region4: #{tpu_custom_call.1} parent=1 // pred_region
      %13 = vsyncadd [#allocation4], 0
      %s14 = sshll.u32 %s0, 4
      %s15 = int_to_ptr.hbm [resolvable:$true] %s14
      %s16 = sshll.u32 [#allocation3], 4
      %s17 = int_to_ptr.vmem [resolvable:$true] %s16
      %22 = dma.hbm_to_vmem [thread:$0]  %s15, 256, %s17, [#allocation4], 128, 128, 8
    $region5: #{tpu_custom_call.1} parent=1 // pred_fallthru
      _
    // Predicated region
    $region6: #{tpu_custom_call.1} parent=1 // pred_check
      _
    $region7: #{tpu_custom_call.1} parent=1 // pred_check_branch
      %24 = sbr.rel (0) target = $region9
    $region8: #{tpu_custom_call.1} parent=1 // pred_region
      %26 = vsyncadd [#allocation7], 0
      %s27 = sshll.u32 %s1, 4
      %s28 = int_to_ptr.hbm [resolvable:$true] %s27
      %s29 = sshll.u32 [#allocation6], 4
      %s30 = int_to_ptr.vmem [resolvable:$true] %s29
      %35 = dma.hbm_to_vmem [thread:$0]  %s28, 512, %s30, [#allocation7], 128, 128, 8
    $region9: #{tpu_custom_call.1} parent=1 // pred_fallthru
      _
    // Predicated region
    $region10: #{tpu_custom_call.1} parent=1 // pred_check
      _
    $region11: #{tpu_custom_call.1} parent=1 // pred_check_branch
      %37 = sbr.rel (0) target = $region13
    $region12: #{tpu_custom_call.1} parent=1 // pred_region
      %39 = dma.done [#allocation4], 256
    $region13: #{tpu_custom_call.1} parent=1 // pred_fallthru
      _
    // Predicated region
    $region14: #{tpu_custom_call.1} parent=1 // pred_check
      _
    $region15: #{tpu_custom_call.1} parent=1 // pred_check_branch
      %41 = sbr.rel (0) target = $region17
    $region16: #{tpu_custom_call.1} parent=1 // pred_region
      %43 = dma.done [#allocation7], 512
    $region17: #{tpu_custom_call.1} parent=1 // pred_fallthru
      _
    %p44 = scmp.eq.s32.totalorder 0, 0
    // Predicated region
    $region18: #{tpu_custom_call.1} parent=1 // pred_check
      %p45 = pneg %p44
    $region19: #{tpu_custom_call.1} parent=1 // pred_check_branch
      %47 = sbr.rel (%p45) target = $region21
    $region20: #{tpu_custom_call.1} parent=1 // pred_region
      %vm48 = vcmask 261120
      %49 = vst.msk [vmem:[#allocation2] sm:$0xff] %vm48, 0.0
      %50 = vst.msk [vmem:[#allocation2 + $0x8] sm:$0xff] %vm48, 0.0
    $region21: #{tpu_custom_call.1} parent=1 // pred_fallthru
      _
    %v51 = vld [vmem:[#allocation2] sm:$0xff]
    %v52 = vld [vmem:[#allocation2 + $0x8] sm:$0xff]
    %v53 = vld [vmem:[#allocation3] sm:$0xff]
    %v54 = vld [vmem:[#allocation3 + $0x8] sm:$0xff]
    %v55 = vld [vmem:[#allocation6] sm:$0xff]
    %v56 = vld [vmem:[#allocation6 + $0x8] sm:$0xff]
    %v57 = vld [vmem:[#allocation6 + $0x10] sm:$0xff]
    %v58 = vld [vmem:[#allocation6 + $0x18] sm:$0xff]
    %vm59 = vcmask 261120
    %v61 = vsel %vm59, %v53, 0
    %v64 = vsel %vm59, %v54, 0
    %66 = vmatpush.msra.mxu0 0.0
    %67 = vmatpush.msra.mxu0 0.0
    %68 = vmatpush.msra.mxu0 0.0
    %69 = vmatpush.msra.mxu0 0.0
    %70 = vmatpush.msra.mxu0 0.0
    %71 = vmatpush.msra.mxu0 0.0
    %72 = vmatpush.msra.mxu0 0.0
    %73 = vmatpush.msra.mxu0 0.0
    %74 = vmatpush.msra.mxu0 0.0
    %75 = vmatpush.msra.mxu0 0.0
    %76 = vmatpush.msra.mxu0 0.0
    %77 = vmatpush.msra.mxu0 0.0
    %78 = vmatpush.msra.mxu0 %v58
    %79 = vmatpush.msra.mxu0 %v57
    %80 = vmatpush.msra.mxu0 %v56
    %81 = vmatpush.msra.mxu0 %v55
    %82 = vmatmul.f32.gmra.mxu0 %v61
    %v83 = vpop.f32.mrf.mxu0
    %v84 = vadd.f32 0.0, %v83
    %85 = vmatmul.f32.gmra.mxu0 %v64
    %v86 = vpop.f32.mrf.mxu0
    %v87 = vadd.f32 0.0, %v86
    %88 = vdwg.mxu0
    %v89 = vadd.f32 %v51, %v84
    %v90 = vadd.f32 %v52, %v87
    %91 = vst.msk [vmem:[#allocation2] sm:$0xff] %vm59, %v89
    %92 = vst.msk [vmem:[#allocation2 + $0x8] sm:$0xff] %vm59, %v90
    // Predicated region
    $region22: #{tpu_custom_call.1} parent=1 // pred_check
      %p93 = pneg %p44
    $region23: #{tpu_custom_call.1} parent=1 // pred_check_branch
      %95 = sbr.rel (%p93) target = $region25
    $region24: #{tpu_custom_call.1} parent=1 // pred_region
      %v96 = vld [vmem:[#allocation2] sm:$0xff]
      %v97 = vld [vmem:[#allocation2 + $0x8] sm:$0xff]
      %98 = vst.msk [vmem:[#allocation8] sm:$0xff] %vm59, %v96
      %99 = vst.msk [vmem:[#allocation8 + $0x8] sm:$0xff] %vm59, %v97
    $region25: #{tpu_custom_call.1} parent=1 // pred_fallthru
      _
    // Predicated region
    $region26: #{tpu_custom_call.1} parent=1 // pred_check
      _
    $region27: #{tpu_custom_call.1} parent=1 // pred_check_branch
      %101 = sbr.rel (0) target = $region29
    $region28: #{tpu_custom_call.1} parent=1 // pred_region
      %103 = vsyncadd [#allocation5], 0
      %s104 = sshll.u32 [#allocation8], 4
      %s105 = int_to_ptr.vmem [resolvable:$true] %s104
      %s106 = sshll.u32 %s2, 4
      %s107 = int_to_ptr.hbm [resolvable:$true] %s106
      %112 = dma.vmem_to_hbm [thread:$0]  %s105, 256, %s107, [#allocation5], 128, 128, 8
    $region29: #{tpu_custom_call.1} parent=1 // pred_fallthru
      _
    // Predicated region
    $region30: #{tpu_custom_call.1} parent=1 // pred_check
      _
    $region31: #{tpu_custom_call.1} parent=1 // pred_check_branch
      %114 = sbr.rel (0) target = $region33
    $region32: #{tpu_custom_call.1} parent=1 // pred_region
      %116 = dma.done [#allocation5], 256
    $region33: #{tpu_custom_call.1} parent=1 // pred_fallthru
      _
    %117 = vsyncpa [#allocation4], 1
    %118 = vsyncpa [#allocation7], 1
    %119 = vsyncpa [#allocation5], 1

</llo_original>
